<compile_context>
chip_gen: v7x
topology: tpu7x:2x2x1
jax: 0.10.0
libtpu: 0.0.40
codegen_flags: <defaults>
</compile_context>

<pallas_src>
import functools

import jax
import jax.numpy as jnp
from jax import lax
from jax.experimental import pallas as pl
from jax.experimental.pallas import tpu as pltpu


# ----------------------------- generation tuning ----------------------------

@functools.lru_cache(maxsize=1)
def _vmem_params():
    """Returns (tile_f32_bytes, vmem_limit_bytes_or_None) for the local TPU."""
    try:
        kind = jax.devices()[0].device_kind.lower()
    except Exception:  # pragma: no cover - no devices / interpret mode
        kind = ""
    if "v7" in kind:
        # 64 MiB physical VMEM per TC: bigger tiles amortize the ~0.35us/step
        # overhead (HBM is ~3.2 TB/s), but keep the scoped budget well under 64.
        return 4 << 20, 48 << 20
    if "v6" in kind:
        # 128 MiB physical, 32 MiB scoped default: raise the limit, unify on 4 MiB.
        return 4 << 20, 64 << 20
    if "v5" in kind:
        # 16 MiB scoped default; f32-expanded 2 MiB tile + raised limit is safe.
        return 2 << 20, 64 << 20
    # Unknown chip: conservative tile, leave the scoped default alone.
    return 2 << 20, None


def _compiler_params(dimension_semantics):
    _, vmem_limit = _vmem_params()
    return pltpu.CompilerParams(
        dimension_semantics=dimension_semantics,
        vmem_limit_bytes=vmem_limit,
    )


# ------------------------------ channels_last ------------------------------

def _ln_rows_kernel(x_ref, w_ref, b_ref, o_ref, *, eps, inv_c):
    # x_ref: (TR, C) rows; w_ref/b_ref: (1, C) broadcast params.
    x = x_ref[...].astype(jnp.float32)
    # Single fused sweep: sum and sum-of-squares together.
    s1 = jnp.sum(x, axis=-1, keepdims=True)
    s2 = jnp.sum(x * x, axis=-1, keepdims=True)
    mean = s1 * inv_c
    var = jnp.maximum(s2 * inv_c - mean * mean, 0.0)   # biased var, clamp >= 0
    inv = lax.rsqrt(var + eps)
    w = w_ref[...].astype(jnp.float32)
    b = b_ref[...].astype(jnp.float32)
    o_ref[...] = ((x - mean) * inv * w + b).astype(o_ref.dtype)


def _row_tile(n_rows, n_cols, dtype, tile_f32_bytes):
    itemsize = jnp.dtype(dtype).itemsize
    pack = 8 * max(1, 4 // itemsize)       # 8 (f32), 16 (bf16), 32 (i8/fp8)
    # Budget in f32-expanded bytes (in-kernel upcast dominates VMEM scratch);
    # cap by bytes only, no row cap.
    tr = (tile_f32_bytes // max(n_cols * 4, 1)) // pack * pack
    tr = max(pack, tr)
    if n_rows <= tr:
        return n_rows                       # one block; full dim is always legal
    return tr                               # ragged last block masked by Pallas


def _layernorm_rows(x2d, weight, bias, eps):
    """LayerNorm over the last dim of a (R, C) array."""
    R, C = x2d.shape
    tile_f32_bytes, _ = _vmem_params()
    tr = _row_tile(R, C, x2d.dtype, tile_f32_bytes)
    itemsize = jnp.dtype(x2d.dtype).itemsize

    w2d = weight.reshape(1, C)
    b2d = bias.reshape(1, C)

    kernel = functools.partial(_ln_rows_kernel, eps=eps, inv_c=1.0 / C)
    cost = pl.CostEstimate(
        flops=7 * R * C,
        transcendentals=R,
        bytes_accessed=2 * R * C * itemsize + 2 * C * 4,
    )
    return pl.pallas_call(
        kernel,
        out_shape=jax.ShapeDtypeStruct((R, C), x2d.dtype),
        grid_spec=pltpu.PrefetchScalarGridSpec(
            num_scalar_prefetch=0,
            grid=(pl.cdiv(R, tr),),
            in_specs=[
                pl.BlockSpec((tr, C), lambda i: (i, 0)),
                pl.BlockSpec((1, C), lambda i: (0, 0)),
                pl.BlockSpec((1, C), lambda i: (0, 0)),
            ],
            out_specs=pl.BlockSpec((tr, C), lambda i: (i, 0)),
        ),
        compiler_params=_compiler_params(("parallel",)),
        cost_estimate=cost,
    )(x2d, w2d, b2d)


# ------------------------------ channels_first -----------------------------

def _ln_cfirst_kernel(x_ref, w_ref, b_ref, o_ref, *, eps, inv_c):
    # x_ref: (1, C, TS) native layout; w_ref/b_ref: (C, 1).
    x = x_ref[...].astype(jnp.float32)
    s1 = jnp.sum(x, axis=1, keepdims=True)        # sublane reduce over channels
    s2 = jnp.sum(x * x, axis=1, keepdims=True)
    mean = s1 * inv_c
    var = jnp.maximum(s2 * inv_c - mean * mean, 0.0)
    inv = lax.rsqrt(var + eps)
    w = w_ref[...].astype(jnp.float32)[None, :, :]   # (1, C, 1)
    b = b_ref[...].astype(jnp.float32)[None, :, :]
    o_ref[...] = ((x - mean) * inv * w + b).astype(o_ref.dtype)


def _spatial_tile(S, C, tile_f32_bytes):
    # Budget in f32-expanded bytes; lane-dense (multiple of 128) spatial tile.
    ts = (tile_f32_bytes // max(C * 4, 1)) // 128 * 128
    ts = max(128, ts)
    if S <= ts:
        return S                             # full spatial dim in one block
    return ts                                # multiple of 128; ragged edge masked


def _layernorm_cfirst(x3d, weight, bias, eps):
    """LayerNorm over axis 1 of a (N, C, S) array, no transposes."""
    N, C, S = x3d.shape
    tile_f32_bytes, _ = _vmem_params()
    ts = _spatial_tile(S, C, tile_f32_bytes)
    itemsize = jnp.dtype(x3d.dtype).itemsize

    w2d = weight.reshape(C, 1)
    b2d = bias.reshape(C, 1)

    kernel = functools.partial(_ln_cfirst_kernel, eps=eps, inv_c=1.0 / C)
    cost = pl.CostEstimate(
        flops=7 * N * C * S,
        transcendentals=N * S,
        bytes_accessed=2 * N * C * S * itemsize + 2 * C * 4,
    )
    # Long (spatial-tile) axis leads the grid so megacore sharding on v7x
    # always has many parallel iterations even for N = 1..2.
    return pl.pallas_call(
        kernel,
        out_shape=jax.ShapeDtypeStruct((N, C, S), x3d.dtype),
        grid_spec=pltpu.PrefetchScalarGridSpec(
            num_scalar_prefetch=0,
            grid=(pl.cdiv(S, ts), N),
            in_specs=[
                pl.BlockSpec((1, C, ts), lambda s, n: (n, 0, s)),
                pl.BlockSpec((C, 1), lambda s, n: (0, 0)),
                pl.BlockSpec((C, 1), lambda s, n: (0, 0)),
            ],
            out_specs=pl.BlockSpec((1, C, ts), lambda s, n: (n, 0, s)),
        ),
        compiler_params=_compiler_params(("parallel", "parallel")),
        cost_estimate=cost,
    )(x3d, w2d, b2d)


# --------------------------------- module ----------------------------------

class LayerNormPallas:
    """JAX/Pallas equivalent of the PyTorch LayerNorm module."""

    def __init__(self, normalized_shape, eps=1e-6, data_format="channels_last"):
        self.eps = float(eps)
        self.data_format = data_format
        self.normalized_shape = int(normalized_shape)
        # Deterministic init, exactly as the PyTorch module: ones / zeros.
        self.weight = jnp.ones((self.normalized_shape,), jnp.float32)
        self.bias = jnp.zeros((self.normalized_shape,), jnp.float32)

    def __call__(self, x):
        C = self.normalized_shape
        if self.data_format == "channels_last":
            assert x.shape[-1] == C
            orig_shape = x.shape
            y = _layernorm_rows(x.reshape(-1, C), self.weight, self.bias, self.eps)
            return y.reshape(orig_shape)
        elif self.data_format == "channels_first":
            assert x.shape[1] == C
            orig_shape = x.shape
            N = orig_shape[0]
            S = 1
            for d in orig_shape[2:]:
                S *= int(d)
            # Pure metadata reshape (trailing-dim collapse) -> no extra HBM pass.
            y = _layernorm_cfirst(x.reshape(N, C, S), self.weight, self.bias, self.eps)
            return y.reshape(orig_shape)
        else:
            raise NotImplementedError(
                "Unsupported data_format: {}".format(self.data_format))


# ------------------------------- references --------------------------------

def _reference_channels_last(x, w, b, eps):
    xf = x.astype(jnp.float32)
    m = jnp.mean(xf, axis=-1, keepdims=True)
    v = jnp.mean((xf - m) ** 2, axis=-1, keepdims=True)
    return ((xf - m) / jnp.sqrt(v + eps)) * w + b


def _reference_channels_first(x, w, b, eps):
    xf = x.astype(jnp.float32)
    u = jnp.mean(xf, axis=1, keepdims=True)
    s = jnp.mean((xf - u) ** 2, axis=1, keepdims=True)
    xn = (xf - u) / jnp.sqrt(s + eps)
    bshape = (1, -1) + (1,) * (x.ndim - 2)
    return w.reshape(bshape) * xn + b.reshape(bshape)


if __name__ == "__main__":
    key = jax.random.PRNGKey(0)
    k1, k2 = jax.random.split(key)

    # channels_last: (N, H, W, C) with lane-dense C = 128.
    C_last = 128
    x_last = jax.random.normal(k1, (2, 8, 8, C_last), jnp.float32)
    ln_last = LayerNormPallas(C_last, eps=1e-6, data_format="channels_last")
    y_last = jax.block_until_ready(ln_last(x_last))
    ref_last = _reference_channels_last(x_last, ln_last.weight, ln_last.bias, ln_last.eps)
    assert jnp.allclose(y_last, ref_last, atol=1e-5, rtol=1e-5)

    # channels_first: 5-D (N, C, D, H, W), matching weight[:, None, None, None].
    C_first = 32
    x_first = jax.random.normal(k2, (2, C_first, 4, 4, 4), jnp.float32)
    ln_first = LayerNormPallas(C_first, eps=1e-6, data_format="channels_first")
    y_first = jax.block_until_ready(ln_first(x_first))
    ref_first = _reference_channels_first(x_first, ln_first.weight, ln_first.bias, ln_first.eps)
    assert jnp.allclose(y_first, ref_first, atol=1e-5, rtol=1e-5)

    print("KERNEL_OK")
</pallas_src>

<mosaic_0001>
module attributes {stable_mosaic.version = 11 : i64} {
  func.func @_ln_rows_kernel(%arg0: i32, %arg1: memref<128x128xf32, #tpu.memory_space<vmem>>, %arg2: memref<1x128xf32, #tpu.memory_space<vmem>>, %arg3: memref<1x128xf32, #tpu.memory_space<vmem>>, %arg4: memref<128x128xf32, #tpu.memory_space<vmem>>) attributes {dimension_semantics = [#tpu.dimension_semantics<parallel>], iteration_bounds = array<i64: 1>, scalar_prefetch = 0 : i64, scratch_operands = 0 : i64, tpu.core_type = #tpu.core_type<tc>, window_params = [{transform_indices = @transform_0, window_bounds = array<i64: 128, 128>}, {pipeline_mode = #tpu.pipeline_mode<synchronous>, transform_indices = @transform_1, window_bounds = array<i64: 1, 128>}, {pipeline_mode = #tpu.pipeline_mode<synchronous>, transform_indices = @transform_2, window_bounds = array<i64: 1, 128>}, {transform_indices = @transform_3, window_bounds = array<i64: 128, 128>}]} {
    %c0 = arith.constant 0 : index
    %c0_0 = arith.constant 0 : index
    %0 = vector.load %arg1[%c0, %c0_0] : memref<128x128xf32, #tpu.memory_space<vmem>>, vector<128x128xf32>
    %cst = arith.constant dense<0.000000e+00> : vector<128xf32>
    %1 = vector.multi_reduction <add>, %0, %cst [1] : vector<128x128xf32> to vector<128xf32>
    %2 = vector.shape_cast %1 : vector<128xf32> to vector<128x1xf32>
    %3 = arith.mulf %0, %0 : vector<128x128xf32>
    %cst_1 = arith.constant dense<0.000000e+00> : vector<128xf32>
    %4 = vector.multi_reduction <add>, %3, %cst_1 [1] : vector<128x128xf32> to vector<128xf32>
    %5 = vector.shape_cast %4 : vector<128xf32> to vector<128x1xf32>
    %cst_2 = arith.constant 7.812500e-03 : f32
    %6 = vector.broadcast %cst_2 : f32 to vector<128x1xf32>
    %7 = arith.mulf %2, %6 : vector<128x1xf32>
    %cst_3 = arith.constant 7.812500e-03 : f32
    %8 = vector.broadcast %cst_3 : f32 to vector<128x1xf32>
    %9 = arith.mulf %5, %8 : vector<128x1xf32>
    %10 = arith.mulf %7, %7 : vector<128x1xf32>
    %11 = arith.subf %9, %10 : vector<128x1xf32>
    %cst_4 = arith.constant 0.000000e+00 : f32
    %12 = vector.broadcast %cst_4 : f32 to vector<128x1xf32>
    %13 = arith.maximumf %11, %12 : vector<128x1xf32>
    %cst_5 = arith.constant 9.99999997E-7 : f32
    %14 = vector.broadcast %cst_5 : f32 to vector<128x1xf32>
    %15 = arith.addf %13, %14 : vector<128x1xf32>
    %16 = math.rsqrt %15 : vector<128x1xf32>
    %c0_6 = arith.constant 0 : index
    %c0_7 = arith.constant 0 : index
    %17 = vector.load %arg2[%c0_6, %c0_7] : memref<1x128xf32, #tpu.memory_space<vmem>>, vector<1x128xf32>
    %c0_8 = arith.constant 0 : index
    %c0_9 = arith.constant 0 : index
    %18 = vector.load %arg3[%c0_8, %c0_9] : memref<1x128xf32, #tpu.memory_space<vmem>>, vector<1x128xf32>
    %19 = vector.broadcast %7 : vector<128x1xf32> to vector<128x128xf32>
    %20 = arith.subf %0, %19 : vector<128x128xf32>
    %21 = vector.broadcast %16 : vector<128x1xf32> to vector<128x128xf32>
    %22 = arith.mulf %20, %21 : vector<128x128xf32>
    %23 = vector.broadcast %17 : vector<1x128xf32> to vector<128x128xf32>
    %24 = arith.mulf %22, %23 : vector<128x128xf32>
    %25 = vector.broadcast %18 : vector<1x128xf32> to vector<128x128xf32>
    %26 = arith.addf %24, %25 : vector<128x128xf32>
    %c0_10 = arith.constant 0 : index
    %c0_11 = arith.constant 0 : index
    %27 = vector.load %arg4[%c0_10, %c0_11] : memref<128x128xf32, #tpu.memory_space<vmem>>, vector<128x128xf32>
    tpu.vector_store %arg4[%c0_10, %c0_11], %26 {strides = array<i32>} : memref<128x128xf32, #tpu.memory_space<vmem>>, vector<128x128xf32>,
    return
  }
  func.func @transform_0(%arg0: i32) -> (i32, i32) {
    %c0_i32 = arith.constant 0 : i32
    %c0_i32_0 = arith.constant 0 : i32
    return %arg0, %c0_i32 : i32, i32
  }
  func.func @transform_1(%arg0: i32) -> (i32, i32) {
    %c0_i32 = arith.constant 0 : i32
    %c0_i32_0 = arith.constant 0 : i32
    %c0_i32_1 = arith.constant 0 : i32
    return %c0_i32, %c0_i32_0 : i32, i32
  }
  func.func @transform_2(%arg0: i32) -> (i32, i32) {
    %c0_i32 = arith.constant 0 : i32
    %c0_i32_0 = arith.constant 0 : i32
    %c0_i32_1 = arith.constant 0 : i32
    return %c0_i32, %c0_i32_0 : i32, i32
  }
  func.func @transform_3(%arg0: i32) -> (i32, i32) {
    %c0_i32 = arith.constant 0 : i32
    %c0_i32_0 = arith.constant 0 : i32
    return %arg0, %c0_i32 : i32, i32
  }
}

</mosaic_0001>

<llo_original>
// kernel: tpu_custom_call.1
$region0: #{tpu_custom_call.1}
  #allocation0 [shape = 'u32[]', space=smem, size = 0x4, offset = 0x4, fixed_abs, tag = 'smem constant byte address 0x4 - core index']
  #allocation1 [shape = 'u32[144,128]{1,0:T(1,128)}', space=vmem, size = 0x12000, scoped, tag = 'internal scratch']
  %s0 = inlined_call_operand.hbm [shape: f32[128,128], index: 0, kind: input, shape index: {}]
  %s1 = inlined_call_operand.vmem [shape: f32[1,128], index: 1, kind: input, shape index: {}]
  %s2 = inlined_call_operand.vmem [shape: f32[1,128], index: 2, kind: input, shape index: {}]
  %s3 = inlined_call_operand.hbm [shape: f32[128,128], index: 3, kind: output, shape index: {}]
  %s4 = sld [smem:[#allocation0]]
  $region26: #{tpu_custom_call.1} parent=0
    _
  %s6 = ssub.s32 1, %s4
  %s7 = scalar_select 0, %s6, %s4
  $region1: #{tpu_custom_call.1} parent=0
    #allocation2 [shape = 'u8[65536]{0}', space=vmem, size = 0x10000, scoped, tag = 'input window, operand 0, single buffered']
    #allocation3 [shape = 's32[1]{0}', space=sflag, size = 0x4, scoped, tag = 'scoped memory for tpu_custom_call.1']
    #allocation4 [shape = 's32[1]{0}', space=sflag, size = 0x4, scoped, tag = 'scoped memory for tpu_custom_call.1']
    #allocation5 [shape = 'u8[65536]{0}', space=vmem, size = 0x10000, scoped, tag = 'output window, operand 0, single buffered']
    %8 = vsyncpa [#allocation3], 0
    %9 = vsyncpa [#allocation4], 0
    // Predicated region
    $region2: #{tpu_custom_call.1} parent=1 // pred_check
      _
    $region3: #{tpu_custom_call.1} parent=1 // pred_check_branch
      %11 = sbr.rel (0) target = $region5
    $region4: #{tpu_custom_call.1} parent=1 // pred_region
      %s13 = ssub.s32 2048, 2048
      %14 = vsyncadd [#allocation3], %s13
      %s15 = sshll.u32 [#allocation2], 4
      %s16 = int_to_ptr.vmem [resolvable:$true] %s15
      %21 = dma.hbm_to_vmem [thread:$0]  %s0, 2048, %s16, [#allocation3], 128, 128, 8
    $region5: #{tpu_custom_call.1} parent=1 // pred_fallthru
      _
    // Predicated region
    $region6: #{tpu_custom_call.1} parent=1 // pred_check
      _
    $region7: #{tpu_custom_call.1} parent=1 // pred_check_branch
      %23 = sbr.rel (0) target = $region9
    $region8: #{tpu_custom_call.1} parent=1 // pred_region
      _
    $region9: #{tpu_custom_call.1} parent=1 // pred_fallthru
      _
    // Predicated region
    $region10: #{tpu_custom_call.1} parent=1 // pred_check
      _
    $region11: #{tpu_custom_call.1} parent=1 // pred_check_branch
      %25 = sbr.rel (0) target = $region13
    $region12: #{tpu_custom_call.1} parent=1 // pred_region
      _
    $region13: #{tpu_custom_call.1} parent=1 // pred_fallthru
      _
    // Predicated region
    $region14: #{tpu_custom_call.1} parent=1 // pred_check
      _
    $region15: #{tpu_custom_call.1} parent=1 // pred_check_branch
      %27 = sbr.rel (0) target = $region17
    $region16: #{tpu_custom_call.1} parent=1 // pred_region
      %28 = dma.done [#allocation3], 2048
    $region17: #{tpu_custom_call.1} parent=1 // pred_fallthru
      _
    %v29 = vld [vmem:[#allocation2] sm:$0xff]
    %v30 = vld [vmem:[#allocation2 + $0x8] sm:$0xff]
    %v31 = vld [vmem:[#allocation2 + $0x10] sm:$0xff]
    %v32 = vld [vmem:[#allocation2 + $0x18] sm:$0xff]
    %v33 = vld [vmem:[#allocation2 + $0x20] sm:$0xff]
    %v34 = vld [vmem:[#allocation2 + $0x28] sm:$0xff]
    %v35 = vld [vmem:[#allocation2 + $0x30] sm:$0xff]
    %v36 = vld [vmem:[#allocation2 + $0x38] sm:$0xff]
    %v37 = vld [vmem:[#allocation2 + $0x40] sm:$0xff]
    %v38 = vld [vmem:[#allocation2 + $0x48] sm:$0xff]
    %v39 = vld [vmem:[#allocation2 + $0x50] sm:$0xff]
    %v40 = vld [vmem:[#allocation2 + $0x58] sm:$0xff]
    %v41 = vld [vmem:[#allocation2 + $0x60] sm:$0xff]
    %v42 = vld [vmem:[#allocation2 + $0x68] sm:$0xff]
    %v43 = vld [vmem:[#allocation2 + $0x70] sm:$0xff]
    %v44 = vld [vmem:[#allocation2 + $0x78] sm:$0xff]
    %45 = vadd.xlane.f32.xlu0 %v29
    %v46 = vpop.xlane.xlu0 %45
    %47 = vadd.xlane.f32.xlu0 %v30
    %v48 = vpop.xlane.xlu0 %47
    %49 = vadd.xlane.f32.xlu0 %v31
    %v50 = vpop.xlane.xlu0 %49
    %51 = vadd.xlane.f32.xlu0 %v32
    %v52 = vpop.xlane.xlu0 %51
    %53 = vadd.xlane.f32.xlu0 %v33
    %v54 = vpop.xlane.xlu0 %53
    %55 = vadd.xlane.f32.xlu0 %v34
    %v56 = vpop.xlane.xlu0 %55
    %57 = vadd.xlane.f32.xlu0 %v35
    %v58 = vpop.xlane.xlu0 %57
    %59 = vadd.xlane.f32.xlu0 %v36
    %v60 = vpop.xlane.xlu0 %59
    %61 = vadd.xlane.f32.xlu0 %v37
    %v62 = vpop.xlane.xlu0 %61
    %63 = vadd.xlane.f32.xlu0 %v38
    %v64 = vpop.xlane.xlu0 %63
    %65 = vadd.xlane.f32.xlu0 %v39
    %v66 = vpop.xlane.xlu0 %65
    %67 = vadd.xlane.f32.xlu0 %v40
    %v68 = vpop.xlane.xlu0 %67
    %69 = vadd.xlane.f32.xlu0 %v41
    %v70 = vpop.xlane.xlu0 %69
    %71 = vadd.xlane.f32.xlu0 %v42
    %v72 = vpop.xlane.xlu0 %71
    %73 = vadd.xlane.f32.xlu0 %v43
    %v74 = vpop.xlane.xlu0 %73
    %75 = vadd.xlane.f32.xlu0 %v44
    %v76 = vpop.xlane.xlu0 %75
    %v77 = vmul.f32 %v29, %v29
    %v78 = vmul.f32 %v30, %v30
    %v79 = vmul.f32 %v31, %v31
    %v80 = vmul.f32 %v32, %v32
    %v81 = vmul.f32 %v33, %v33
    %v82 = vmul.f32 %v34, %v34
    %v83 = vmul.f32 %v35, %v35
    %v84 = vmul.f32 %v36, %v36
    %v85 = vmul.f32 %v37, %v37
    %v86 = vmul.f32 %v38, %v38
    %v87 = vmul.f32 %v39, %v39
    %v88 = vmul.f32 %v40, %v40
    %v89 = vmul.f32 %v41, %v41
    %v90 = vmul.f32 %v42, %v42
    %v91 = vmul.f32 %v43, %v43
    %v92 = vmul.f32 %v44, %v44
    %93 = vadd.xlane.f32.xlu0 %v77
    %v94 = vpop.xlane.xlu0 %93
    %95 = vadd.xlane.f32.xlu0 %v78
    %v96 = vpop.xlane.xlu0 %95
    %97 = vadd.xlane.f32.xlu0 %v79
    %v98 = vpop.xlane.xlu0 %97
    %99 = vadd.xlane.f32.xlu0 %v80
    %v100 = vpop.xlane.xlu0 %99
    %101 = vadd.xlane.f32.xlu0 %v81
    %v102 = vpop.xlane.xlu0 %101
    %103 = vadd.xlane.f32.xlu0 %v82
    %v104 = vpop.xlane.xlu0 %103
    %105 = vadd.xlane.f32.xlu0 %v83
    %v106 = vpop.xlane.xlu0 %105
    %107 = vadd.xlane.f32.xlu0 %v84
    %v108 = vpop.xlane.xlu0 %107
    %109 = vadd.xlane.f32.xlu0 %v85
    %v110 = vpop.xlane.xlu0 %109
    %111 = vadd.xlane.f32.xlu0 %v86
    %v112 = vpop.xlane.xlu0 %111
    %113 = vadd.xlane.f32.xlu0 %v87
    %v114 = vpop.xlane.xlu0 %113
    %115 = vadd.xlane.f32.xlu0 %v88
    %v116 = vpop.xlane.xlu0 %115
    %117 = vadd.xlane.f32.xlu0 %v89
    %v118 = vpop.xlane.xlu0 %117
    %119 = vadd.xlane.f32.xlu0 %v90
    %v120 = vpop.xlane.xlu0 %119
    %121 = vadd.xlane.f32.xlu0 %v91
    %v122 = vpop.xlane.xlu0 %121
    %123 = vadd.xlane.f32.xlu0 %v92
    %v124 = vpop.xlane.xlu0 %123
    %v125 = vmul.f32 %v46, 0.0078125
    %v126 = vmul.f32 %v48, 0.0078125
    %v127 = vmul.f32 %v50, 0.0078125
    %v128 = vmul.f32 %v52, 0.0078125
    %v129 = vmul.f32 %v54, 0.0078125
    %v130 = vmul.f32 %v56, 0.0078125
    %v131 = vmul.f32 %v58, 0.0078125
    %v132 = vmul.f32 %v60, 0.0078125
    %v133 = vmul.f32 %v62, 0.0078125
    %v134 = vmul.f32 %v64, 0.0078125
    %v135 = vmul.f32 %v66, 0.0078125
    %v136 = vmul.f32 %v68, 0.0078125
    %v137 = vmul.f32 %v70, 0.0078125
    %v138 = vmul.f32 %v72, 0.0078125
    %v139 = vmul.f32 %v74, 0.0078125
    %v140 = vmul.f32 %v76, 0.0078125
    %v141 = vmul.f32 %v94, 0.0078125
    %v142 = vmul.f32 %v96, 0.0078125
    %v143 = vmul.f32 %v98, 0.0078125
    %v144 = vmul.f32 %v100, 0.0078125
    %v145 = vmul.f32 %v102, 0.0078125
    %v146 = vmul.f32 %v104, 0.0078125
    %v147 = vmul.f32 %v106, 0.0078125
    %v148 = vmul.f32 %v108, 0.0078125
    %v149 = vmul.f32 %v110, 0.0078125
    %v150 = vmul.f32 %v112, 0.0078125
    %v151 = vmul.f32 %v114, 0.0078125
    %v152 = vmul.f32 %v116, 0.0078125
    %v153 = vmul.f32 %v118, 0.0078125
    %v154 = vmul.f32 %v120, 0.0078125
    %v155 = vmul.f32 %v122, 0.0078125
    %v156 = vmul.f32 %v124, 0.0078125
    %v157 = vmul.f32 %v125, %v125
    %v158 = vmul.f32 %v126, %v126
    %v159 = vmul.f32 %v127, %v127
    %v160 = vmul.f32 %v128, %v128
    %v161 = vmul.f32 %v129, %v129
    %v162 = vmul.f32 %v130, %v130
    %v163 = vmul.f32 %v131, %v131
    %v164 = vmul.f32 %v132, %v132
    %v165 = vmul.f32 %v133, %v133
    %v166 = vmul.f32 %v134, %v134
    %v167 = vmul.f32 %v135, %v135
    %v168 = vmul.f32 %v136, %v136
    %v169 = vmul.f32 %v137, %v137
    %v170 = vmul.f32 %v138, %v138
    %v171 = vmul.f32 %v139, %v139
    %v172 = vmul.f32 %v140, %v140
    %v173 = vsub.f32 %v141, %v157
    %v174 = vsub.f32 %v142, %v158
    %v175 = vsub.f32 %v143, %v159
    %v176 = vsub.f32 %v144, %v160
    %v177 = vsub.f32 %v145, %v161
    %v178 = vsub.f32 %v146, %v162
    %v179 = vsub.f32 %v147, %v163
    %v180 = vsub.f32 %v148, %v164
    %v181 = vsub.f32 %v149, %v165
    %v182 = vsub.f32 %v150, %v166
    %v183 = vsub.f32 %v151, %v167
    %v184 = vsub.f32 %v152, %v168
    %v185 = vsub.f32 %v153, %v169
    %v186 = vsub.f32 %v154, %v170
    %v187 = vsub.f32 %v155, %v171
    %v188 = vsub.f32 %v156, %v172
    %v189 = vmax.f32 %v173, 0.0
    %v190 = vmax.f32 %v174, 0.0
    %v191 = vmax.f32 %v175, 0.0
    %v192 = vmax.f32 %v176, 0.0
    %v193 = vmax.f32 %v177, 0.0
    %v194 = vmax.f32 %v178, 0.0
    %v195 = vmax.f32 %v179, 0.0
    %v196 = vmax.f32 %v180, 0.0
    %v197 = vmax.f32 %v181, 0.0
    %v198 = vmax.f32 %v182, 0.0
    %v199 = vmax.f32 %v183, 0.0
    %v200 = vmax.f32 %v184, 0.0
    %v201 = vmax.f32 %v185, 0.0
    %v202 = vmax.f32 %v186, 0.0
    %v203 = vmax.f32 %v187, 0.0
    %v204 = vmax.f32 %v188, 0.0
    %v205 = vadd.f32 %v189, 1e-06
    %v206 = vadd.f32 %v190, 1e-06
    %v207 = vadd.f32 %v191, 1e-06
    %v208 = vadd.f32 %v192, 1e-06
    %v209 = vadd.f32 %v193, 1e-06
    %v210 = vadd.f32 %v194, 1e-06
    %v211 = vadd.f32 %v195, 1e-06
    %v212 = vadd.f32 %v196, 1e-06
    %v213 = vadd.f32 %v197, 1e-06
    %v214 = vadd.f32 %v198, 1e-06
    %v215 = vadd.f32 %v199, 1e-06
    %v216 = vadd.f32 %v200, 1e-06
    %v217 = vadd.f32 %v201, 1e-06
    %v218 = vadd.f32 %v202, 1e-06
    %v219 = vadd.f32 %v203, 1e-06
    %v220 = vadd.f32 %v204, 1e-06
    %v221 = vrsqrt.pop %v205
    %v222 = vrsqrt.pop %v206
    %v223 = vrsqrt.pop %v207
    %v224 = vrsqrt.pop %v208
    %v225 = vrsqrt.pop %v209
    %v226 = vrsqrt.pop %v210
    %v227 = vrsqrt.pop %v211
    %v228 = vrsqrt.pop %v212
    %v229 = vrsqrt.pop %v213
    %v230 = vrsqrt.pop %v214
    %v231 = vrsqrt.pop %v215
    %v232 = vrsqrt.pop %v216
    %v233 = vrsqrt.pop %v217
    %v234 = vrsqrt.pop %v218
    %v235 = vrsqrt.pop %v219
    %v236 = vrsqrt.pop %v220
    %v237 = vld [vmem:[%s1] sm:$0x1]
    %v238 = vld [vmem:[%s2] sm:$0x1]
    %v239 = vsub.f32 %v29, %v125
    %v240 = vsub.f32 %v30, %v126
    %v241 = vsub.f32 %v31, %v127
    %v242 = vsub.f32 %v32, %v128
    %v243 = vsub.f32 %v33, %v129
    %v244 = vsub.f32 %v34, %v130
    %v245 = vsub.f32 %v35, %v131
    %v246 = vsub.f32 %v36, %v132
    %v247 = vsub.f32 %v37, %v133
    %v248 = vsub.f32 %v38, %v134
    %v249 = vsub.f32 %v39, %v135
    %v250 = vsub.f32 %v40, %v136
    %v251 = vsub.f32 %v41, %v137
    %v252 = vsub.f32 %v42, %v138
    %v253 = vsub.f32 %v43, %v139
    %v254 = vsub.f32 %v44, %v140
    %v255 = vmul.f32 %v239, %v221
    %v256 = vmul.f32 %v240, %v222
    %v257 = vmul.f32 %v241, %v223
    %v258 = vmul.f32 %v242, %v224
    %v259 = vmul.f32 %v243, %v225
    %v260 = vmul.f32 %v244, %v226
    %v261 = vmul.f32 %v245, %v227
    %v262 = vmul.f32 %v246, %v228
    %v263 = vmul.f32 %v247, %v229
    %v264 = vmul.f32 %v248, %v230
    %v265 = vmul.f32 %v249, %v231
    %v266 = vmul.f32 %v250, %v232
    %v267 = vmul.f32 %v251, %v233
    %v268 = vmul.f32 %v252, %v234
    %v269 = vmul.f32 %v253, %v235
    %v270 = vmul.f32 %v254, %v236
    %v272 = vlaneseq
    %v273 = vshrl.u32 %v272, 7
    %v274 = vsub.s32 0, %v273
    %v275 = vrot.slane %v237, %v274
    %v277 = vmul.f32 %v255, %v275
    %v278 = vmul.f32 %v256, %v275
    %v279 = vmul.f32 %v257, %v275
    %v280 = vmul.f32 %v258, %v275
    %v281 = vmul.f32 %v259, %v275
    %v282 = vmul.f32 %v260, %v275
    %v283 = vmul.f32 %v261, %v275
    %v284 = vmul.f32 %v262, %v275
    %v285 = vmul.f32 %v263, %v275
    %v286 = vmul.f32 %v264, %v275
    %v287 = vmul.f32 %v265, %v275
    %v288 = vmul.f32 %v266, %v275
    %v289 = vmul.f32 %v267, %v275
    %v290 = vmul.f32 %v268, %v275
    %v291 = vmul.f32 %v269, %v275
    %v292 = vmul.f32 %v270, %v275
    %v294 = vlaneseq
    %v295 = vshrl.u32 %v294, 7
    %v296 = vsub.s32 0, %v295
    %v297 = vrot.slane %v238, %v296
    %v299 = vadd.f32 %v277, %v297
    %v300 = vadd.f32 %v278, %v297
    %v301 = vadd.f32 %v279, %v297
    %v302 = vadd.f32 %v280, %v297
    %v303 = vadd.f32 %v281, %v297
    %v304 = vadd.f32 %v282, %v297
    %v305 = vadd.f32 %v283, %v297
    %v306 = vadd.f32 %v284, %v297
    %v307 = vadd.f32 %v285, %v297
    %v308 = vadd.f32 %v286, %v297
    %v309 = vadd.f32 %v287, %v297
    %v310 = vadd.f32 %v288, %v297
    %v311 = vadd.f32 %v289, %v297
    %v312 = vadd.f32 %v290, %v297
    %v313 = vadd.f32 %v291, %v297
    %v314 = vadd.f32 %v292, %v297
    %315 = vst [vmem:[#allocation5] sm:$0xff] %v299
    %316 = vst [vmem:[#allocation5 + $0x8] sm:$0xff] %v300
    %317 = vst [vmem:[#allocation5 + $0x10] sm:$0xff] %v301
    %318 = vst [vmem:[#allocation5 + $0x18] sm:$0xff] %v302
    %319 = vst [vmem:[#allocation5 + $0x20] sm:$0xff] %v303
    %320 = vst [vmem:[#allocation5 + $0x28] sm:$0xff] %v304
    %321 = vst [vmem:[#allocation5 + $0x30] sm:$0xff] %v305
    %322 = vst [vmem:[#allocation5 + $0x38] sm:$0xff] %v306
    %323 = vst [vmem:[#allocation5 + $0x40] sm:$0xff] %v307
    %324 = vst [vmem:[#allocation5 + $0x48] sm:$0xff] %v308
    %325 = vst [vmem:[#allocation5 + $0x50] sm:$0xff] %v309
    %326 = vst [vmem:[#allocation5 + $0x58] sm:$0xff] %v310
    %327 = vst [vmem:[#allocation5 + $0x60] sm:$0xff] %v311
    %328 = vst [vmem:[#allocation5 + $0x68] sm:$0xff] %v312
    %329 = vst [vmem:[#allocation5 + $0x70] sm:$0xff] %v313
    %330 = vst [vmem:[#allocation5 + $0x78] sm:$0xff] %v314
    // Predicated region
    $region18: #{tpu_custom_call.1} parent=1 // pred_check
      _
    $region19: #{tpu_custom_call.1} parent=1 // pred_check_branch
      %332 = sbr.rel (0) target = $region21
    $region20: #{tpu_custom_call.1} parent=1 // pred_region
      %s334 = ssub.s32 2048, 2048
      %335 = vsyncadd [#allocation4], %s334
      %s336 = sshll.u32 [#allocation5], 4
      %s337 = int_to_ptr.vmem [resolvable:$true] %s336
      %342 = dma.vmem_to_hbm [thread:$0]  %s337, 2048, %s3, [#allocation4], 128, 128, 8
    $region21: #{tpu_custom_call.1} parent=1 // pred_fallthru
      _
    // Predicated region
    $region22: #{tpu_custom_call.1} parent=1 // pred_check
      _
    $region23: #{tpu_custom_call.1} parent=1 // pred_check_branch
      %344 = sbr.rel (0) target = $region25
    $region24: #{tpu_custom_call.1} parent=1 // pred_region
      %345 = dma.done [#allocation4], 2048
    $region25: #{tpu_custom_call.1} parent=1 // pred_fallthru
      _
    %346 = vsyncpa [#allocation3], 1
    %347 = vsyncpa [#allocation4], 1

</llo_original>
